<compile_context>
chip_gen: v7x
topology: tpu7x:2x2x1
jax: 0.10.0
libtpu: 0.0.40
codegen_flags: <defaults>
</compile_context>

<pallas_src>
import functools

import jax
import jax.numpy as jnp
from jax.experimental import pallas as pl
from jax.experimental.pallas import tpu as pltpu


def _softmax_pool_kernel(x_ref, w_ref, s_ref, o_ref):
    """x_ref: (1, C, P*TL); w_ref: (C, C); s_ref: (P*TL, TL); o_ref: (1, C, TL)."""
    xt = x_ref[0]                                        # (C, P*TL), native dtype

    # nn.Linear (no bias), applied per position:
    #   logits[d, j] = sum_c weight[d, c] * x[c, j]      -- single fused MXU call.
    logits = jnp.dot(w_ref[...], xt, preferred_element_type=jnp.float32)

    # Softmax over each group of P adjacent positions (lanes).  The per-row max
    # over the whole tile is uniform within every pool group, so it is a valid
    # softmax shift: exp never overflows.  (A whole group can only underflow if
    # its logits sit >~85 below the row max -- unreachable for this module's
    # data; the tiny-clamp below keeps even that case finite instead of NaN.)
    m = jnp.max(logits, axis=-1, keepdims=True)          # XLU row reduce
    e = jnp.exp(logits - m)                              # EUP, f32
    xe = xt.astype(jnp.float32) * e                      # f32 weighted values

    # Pool-group reductions as MXU matmuls against the resident 0/1 selector
    # S[j, l] = (j // P == l): they sum over the pool group and compress the
    # lane axis from P*TL to TL, producing the output directly in (C, TL)
    # layout (lane-dense, no in-kernel transpose or strided lane ops).
    cd = s_ref.dtype
    num = jnp.dot(xe.astype(cd), s_ref[...], preferred_element_type=jnp.float32)
    den = jnp.dot(e.astype(cd), s_ref[...], preferred_element_type=jnp.float32)
    den = jnp.maximum(den, 1.1754944e-38)                # guard: never divide by 0

    exact = jnp.dtype(o_ref.dtype) == jnp.dtype(jnp.float32)
    inv = pl.reciprocal(den, approx=not exact)           # EUP (approx for bf16 out)
    o_ref[0] = (num * inv).astype(o_ref.dtype)


def _vmem_budget():
    """(tile-sizing budget, scoped vmem limit) in bytes, generation aware."""
    cap = 64 << 20                                       # assume v7x-class if query fails
    try:
        cap = int(getattr(pltpu.get_tpu_info(), "vmem_capacity_bytes", cap)) or cap
    except Exception:
        pass
    if cap <= (64 << 20):                                # v7x: 64 MiB/TC -> keep headroom
        return 26 << 20, 40 << 20
    return 72 << 20, 96 << 20                            # v5e / v6e: 128 MiB physical


def _choose_tl(l_out, p, c, itemsize, budget):
    """Pick the lane tile TL (pooled positions per grid step) that fits VMEM."""
    def cost(tl):
        return (2 * c * p * tl * itemsize                # x block (double-buffered)
                + 2 * c * tl * itemsize                  # out block (double-buffered)
                + 2 * c * c * itemsize                   # resident weight
                + 2 * p * tl * tl * itemsize             # resident pool-sum selector
                + (3 * p + 3) * c * tl * 4)              # in-kernel f32 temporaries

    # Preferred: lane-dense multiples of 128 that divide Lout (no padding).
    for cand in (1024, 768, 512, 384, 256, 128):
        if cand <= l_out and l_out % cand == 0 and cost(cand) <= budget:
            return cand, False
    # Whole length as a single tile (covers small / odd Lout via the
    # "block == full dim" escape from the (8,128) constraint).
    if cost(l_out) <= budget:
        return l_out, False
    # Fallback: pad Lout up to a multiple of a budget-fitting 128-multiple tile.
    for cand in (512, 384, 256, 128):
        if cost(cand) <= budget:
            return cand, True
    return 128, True


@functools.partial(jax.jit, static_argnames=("pool_size",))
def softmax_pooling_1d(x, weight, pool_size=2):
    """x: (B, C, L); weight: (C, C) nn.Linear weight [out, in]. Returns (B, C, L//pool_size)."""
    B, C, L = x.shape
    assert L % pool_size == 0, "input length must be divisible by pool_size"
    P = pool_size
    l_out = L // P
    dt = x.dtype
    isz = jnp.dtype(dt).itemsize

    budget, vmem_limit = _vmem_budget()
    TL, _need_pad = _choose_tl(l_out, P, C, isz, budget)
    l_pad = ((l_out + TL - 1) // TL) * TL
    if l_pad != l_out:
        # Zero padding is safe: padded pool groups only feed padded outputs
        # (sliced off below) and the per-row softmax shift stays valid.
        x = jnp.pad(x, ((0, 0), (0, 0), (0, (l_pad - l_out) * P)))
    n_tiles = l_pad // TL

    # Weight in the activation dtype so the logits matmul runs on the fast MXU
    # path (bf16 weight for bf16 activations; exact f32 path for f32 inputs).
    w = weight.astype(dt)
    # Pool-sum selector: S[j, l] = 1 iff position j belongs to output group l.
    sel = (jnp.arange(P * TL, dtype=jnp.int32)[:, None] // P
           == jnp.arange(TL, dtype=jnp.int32)[None, :]).astype(dt)

    cost = pl.CostEstimate(
        flops=int(2 * C * C * P * l_pad * B + 4 * C * P * TL * l_pad * B),
        transcendentals=int(B * C * P * l_pad),
        bytes_accessed=int((B * C * P * l_pad + B * C * l_pad + C * C
                            + P * TL * TL) * isz),
    )

    out = pl.pallas_call(
        _softmax_pool_kernel,
        out_shape=jax.ShapeDtypeStruct((B, C, l_pad), dt),
        grid=(B, n_tiles),
        in_specs=[
            pl.BlockSpec((1, C, P * TL), lambda b, i: (b, 0, i)),   # x tile (NCL native)
            pl.BlockSpec((C, C), lambda b, i: (0, 0)),              # resident weight
            pl.BlockSpec((P * TL, TL), lambda b, i: (0, 0)),        # resident selector
        ],
        out_specs=pl.BlockSpec((1, C, TL), lambda b, i: (b, 0, i)), # (B, C, Lout) direct
        compiler_params=pltpu.CompilerParams(
            dimension_semantics=("parallel", "parallel"),           # megacore-shard B/L
            vmem_limit_bytes=vmem_limit,
        ),
        cost_estimate=cost,
    )(x, w, sel)

    if l_pad != l_out:
        out = out[:, :, :l_out]
    return out


def _reference(x, weight, pool_size):
    B, C, L = x.shape
    l_out = L // pool_size
    xr = x.reshape(B, C, l_out, pool_size).transpose(0, 2, 3, 1)     # (b, l, p, c)
    logits = jnp.einsum("blpc,dc->blpd", xr, weight,
                        precision=jax.lax.Precision.HIGHEST)
    sm = jax.nn.softmax(logits, axis=-2)
    y = jnp.sum(xr * sm, axis=-2)                                    # (b, l, c)
    return y.transpose(0, 2, 1)                                      # (b, c, l)


if __name__ == "__main__":
    B, C, L = 2, 4, 16
    pool_size = 2
    w_init_scale = 2.0

    key = jax.random.PRNGKey(0)
    kx, kw, kx2 = jax.random.split(key, 3)

    x = jax.random.normal(kx, (B, C, L), dtype=jnp.float32)
    # Deterministic module init: eye(C) * w_init_scale (matches __init__).
    weight_eye = jnp.eye(C, dtype=jnp.float32) * w_init_scale

    y = jax.block_until_ready(softmax_pooling_1d(x, weight_eye, pool_size=pool_size))
    assert y.shape == (B, C, L // pool_size)
    assert jnp.allclose(y, _reference(x, weight_eye, pool_size), atol=2e-3, rtol=2e-3)

    # A non-symmetric weight catches any weight-orientation / pool-pairing bug.
    weight_rnd = jax.random.normal(kw, (C, C), dtype=jnp.float32)
    y2 = jax.block_until_ready(softmax_pooling_1d(x, weight_rnd, pool_size=pool_size))
    assert jnp.allclose(y2, _reference(x, weight_rnd, pool_size), atol=2e-3, rtol=2e-3)

    # Lane-dense, multi-tile path (TL a multiple of 128, grid > 1 along L).
    B2, C2, L2 = 1, 128, 4096
    x2 = jax.random.normal(kx2, (B2, C2, L2), dtype=jnp.float32)
    w2 = jnp.eye(C2, dtype=jnp.float32) * w_init_scale
    y3 = jax.block_until_ready(softmax_pooling_1d(x2, w2, pool_size=pool_size))
    assert jnp.allclose(y3, _reference(x2, w2, pool_size), atol=2e-3, rtol=2e-3)

    # bf16 activations (bf16 MXU operands, approx reciprocal path).
    xb = x.astype(jnp.bfloat16)
    yb = jax.block_until_ready(softmax_pooling_1d(xb, weight_eye, pool_size=pool_size))
    assert jnp.allclose(yb.astype(jnp.float32), _reference(x, weight_eye, pool_size),
                        atol=3e-2, rtol=3e-2)

    print("KERNEL_OK")
</pallas_src>

<mosaic_0001>
module attributes {stable_mosaic.version = 11 : i64} {
  func.func @_softmax_pool_kernel(%arg0: i32, %arg1: i32, %arg2: memref<1x4x16xf32, #tpu.memory_space<vmem>>, %arg3: memref<4x4xf32, #tpu.memory_space<vmem>>, %arg4: memref<16x8xf32, #tpu.memory_space<vmem>>, %arg5: memref<1x4x8xf32, #tpu.memory_space<vmem>>) attributes {dimension_semantics = [#tpu.dimension_semantics<parallel>, #tpu.dimension_semantics<parallel>], iteration_bounds = array<i64: 2, 1>, scalar_prefetch = 0 : i64, scratch_operands = 0 : i64, tpu.core_type = #tpu.core_type<tc>, window_params = [{transform_indices = @transform_0, window_bounds = array<i64: 1, 4, 16>}, {pipeline_mode = #tpu.pipeline_mode<synchronous>, transform_indices = @transform_1, window_bounds = array<i64: 4, 4>}, {pipeline_mode = #tpu.pipeline_mode<synchronous>, transform_indices = @transform_2, window_bounds = array<i64: 16, 8>}, {transform_indices = @transform_3, window_bounds = array<i64: 1, 4, 8>}]} {
    %c0 = arith.constant 0 : index
    %c0_0 = arith.constant 0 : index
    %c0_1 = arith.constant 0 : index
    %0 = vector.load %arg2[%c0, %c0_0, %c0_1] : memref<1x4x16xf32, #tpu.memory_space<vmem>>, vector<1x4x16xf32>
    %1 = vector.shape_cast %0 : vector<1x4x16xf32> to vector<4x16xf32>
    %c0_2 = arith.constant 0 : index
    %c0_3 = arith.constant 0 : index
    %2 = vector.load %arg3[%c0_2, %c0_3] : memref<4x4xf32, #tpu.memory_space<vmem>>, vector<4x4xf32>
    %cst = arith.constant dense<0.000000e+00> : vector<4x16xf32>
    %3 = tpu.matmul %2, %1, %cst {dimension_numbers = #tpu.dot_dimension_numbers<[1], [0], [0], [1], [0, 0, 1, 1], [], []>} : vector<4x4xf32>, vector<4x16xf32>, vector<4x16xf32> -> vector<4x16xf32>
    %cst_4 = arith.constant dense<0xFF800000> : vector<4xf32>
    %4 = vector.multi_reduction <maximumf>, %3, %cst_4 [1] : vector<4x16xf32> to vector<4xf32>
    %5 = vector.shape_cast %4 : vector<4xf32> to vector<4x1xf32>
    %6 = vector.broadcast %5 : vector<4x1xf32> to vector<4x16xf32>
    %7 = arith.subf %3, %6 : vector<4x16xf32>
    %8 = math.exp %7 : vector<4x16xf32>
    %9 = arith.mulf %1, %8 : vector<4x16xf32>
    %c0_5 = arith.constant 0 : index
    %c0_6 = arith.constant 0 : index
    %10 = vector.load %arg4[%c0_5, %c0_6] : memref<16x8xf32, #tpu.memory_space<vmem>>, vector<16x8xf32>
    %cst_7 = arith.constant dense<0.000000e+00> : vector<4x8xf32>
    %11 = tpu.matmul %9, %10, %cst_7 {dimension_numbers = #tpu.dot_dimension_numbers<[1], [0], [0], [1], [0, 0, 1, 1], [], []>} : vector<4x16xf32>, vector<16x8xf32>, vector<4x8xf32> -> vector<4x8xf32>
    %c0_8 = arith.constant 0 : index
    %c0_9 = arith.constant 0 : index
    %12 = vector.load %arg4[%c0_8, %c0_9] : memref<16x8xf32, #tpu.memory_space<vmem>>, vector<16x8xf32>
    %cst_10 = arith.constant dense<0.000000e+00> : vector<4x8xf32>
    %13 = tpu.matmul %8, %12, %cst_10 {dimension_numbers = #tpu.dot_dimension_numbers<[1], [0], [0], [1], [0, 0, 1, 1], [], []>} : vector<4x16xf32>, vector<16x8xf32>, vector<4x8xf32> -> vector<4x8xf32>
    %cst_11 = arith.constant 1.17549435E-38 : f32
    %14 = vector.broadcast %cst_11 : f32 to vector<4x8xf32>
    %15 = arith.maximumf %13, %14 : vector<4x8xf32>
    %16 = tpu.reciprocal %15 : vector<4x8xf32> -> vector<4x8xf32>
    %17 = arith.mulf %11, %16 : vector<4x8xf32>
    %c0_12 = arith.constant 0 : index
    %c0_13 = arith.constant 0 : index
    %c0_14 = arith.constant 0 : index
    %18 = vector.load %arg5[%c0_12, %c0_13, %c0_14] : memref<1x4x8xf32, #tpu.memory_space<vmem>>, vector<1x4x8xf32>
    %19 = vector.shape_cast %18 : vector<1x4x8xf32> to vector<4x8xf32>
    %20 = vector.shape_cast %17 : vector<4x8xf32> to vector<1x4x8xf32>
    tpu.vector_store %arg5[%c0_12, %c0_13, %c0_14], %20 {strides = array<i32>} : memref<1x4x8xf32, #tpu.memory_space<vmem>>, vector<1x4x8xf32>,
    return
  }
  func.func @transform_0(%arg0: i32, %arg1: i32) -> (i32, i32, i32) {
    %c0_i32 = arith.constant 0 : i32
    %c0_i32_0 = arith.constant 0 : i32
    return %arg0, %c0_i32, %arg1 : i32, i32, i32
  }
  func.func @transform_1(%arg0: i32, %arg1: i32) -> (i32, i32) {
    %c0_i32 = arith.constant 0 : i32
    %c0_i32_0 = arith.constant 0 : i32
    %c0_i32_1 = arith.constant 0 : i32
    return %c0_i32, %c0_i32_0 : i32, i32
  }
  func.func @transform_2(%arg0: i32, %arg1: i32) -> (i32, i32) {
    %c0_i32 = arith.constant 0 : i32
    %c0_i32_0 = arith.constant 0 : i32
    %c0_i32_1 = arith.constant 0 : i32
    return %c0_i32, %c0_i32_0 : i32, i32
  }
  func.func @transform_3(%arg0: i32, %arg1: i32) -> (i32, i32, i32) {
    %c0_i32 = arith.constant 0 : i32
    %c0_i32_0 = arith.constant 0 : i32
    return %arg0, %c0_i32, %arg1 : i32, i32, i32
  }
}

</mosaic_0001>

<llo_original>
// kernel: softmax_pooling_1d.1
$region0: #{softmax_pooling_1d.1}
  #allocation0 [shape = 'u32[]', space=smem, size = 0x4, offset = 0x4, fixed_abs, tag = 'smem constant byte address 0x4 - core index']
  #allocation1 [shape = 'u32[144,128]{1,0:T(1,128)}', space=vmem, size = 0x12000, scoped, tag = 'internal scratch']
  %s0 = inlined_call_operand.vmem [shape: f32[2,4,16], index: 0, kind: input, shape index: {}]
  %s1 = inlined_call_operand.vmem [shape: f32[4,4], index: 1, kind: input, shape index: {}]
  %s2 = inlined_call_operand.vmem [shape: f32[16,8], index: 2, kind: input, shape index: {}]
  %s3 = inlined_call_operand.hbm [shape: f32[2,4,8], index: 3, kind: output, shape index: {}]
  %s4 = sld [smem:[#allocation0]]
  $region45: #{softmax_pooling_1d.1} parent=0
    _
  %s6 = ssub.s32 1, %s4
  %s7 = scalar_select 0, %s6, %s4
  $region1: #{softmax_pooling_1d.1} parent=0
    #allocation2 [shape = 'u8[4096]{0}', space=vmem, size = 0x1000, scoped, tag = 'output window, operand 0']
    #allocation3 [shape = 's32[2]{0}', space=sflag, size = 0x8, scoped, tag = 'scoped memory for softmax_pooling_1d.1']
    %8 = vsyncpa [#allocation3], 0
    %s9 = scalar_lea.sflag [#allocation3], 1
    %10 = vsyncpa %s9, 0
    loop: start=0, step=1, limit=4
    $region2: #{softmax_pooling_1d.1} parent=1 // loop_pre_header
      _
    $region3: #{softmax_pooling_1d.1} parent=1 // loop_header
      %s12 = sphi 0, %s16
      %p13 = scmp.ge.s32.totalorder %s12, 4
      %s19 = sphi 0, %s31
      %s20 = sphi 0, %s27
      %s21 = sphi 0, %s19
      %s22 = sphi 0, %s20
      %s23 = sphi 0, %s21
      %s24 = sphi 0, %s22
      %s36 = sphi 0, %s38
      %s39 = sphi 0, %s36
      %s40 = sphi 0, %s39
      %s56 = sphi 0, %s40
      %s60 = sphi 0, %s60
      %s62 = sphi 0, %s60
      %s63 = sphi 0, %s62
      %s77 = sphi 0, %s63
      %s81 = sphi 0, %s81
      %s83 = sphi 0, %s81
      %s84 = sphi 0, %s83
      %s98 = sphi 0, %s84
      %s106 = sphi 0, %s108
      %s109 = sphi 0, %s106
      %s110 = sphi 0, %s109
      %s126 = sphi 0, %s110
    $region4: #{softmax_pooling_1d.1} parent=1 // loop_header_branch
      %15 = sbr.rel (%p13) target = $region8
    $region5: #{softmax_pooling_1d.1} parent=1 // loop_body
      %s17 = ssub.s32 %s12, 1
      %s18 = ssub.s32 %s12, 2
      %s25 = sadd.s32 1, %s20
      %p26 = scmp.ge.s32.totalorder %s25, 1
      %s27 = scalar_select %p26, 0, %s25
      %s28 = sadd.s32 1, %s19
      %s29 = scalar_select %p26, %s28, %s19
      %p30 = scmp.ge.s32.totalorder %s29, 2
      %s31 = scalar_select %p30, 0, %s29
      %s32 = ssub.s32 %s19, %s31
      %s33 = ssub.s32 %s20, %s27
      %s34 = sor.u32 %s32, %s33
      %p35 = scmp.eq.s32.totalorder %s34, 0
      %s37 = sadd.s32 %s36, 1
      %s38 = scalar_select %p35, %s36, %s37
      %p41 = pneg %p35
      %p42 = scmp.eq.s32.totalorder %s12, 1
      %p43 = por %p41, %p42
      %p44 = scmp.ne.s32.totalorder %s36, %s39
      %p45 = scmp.eq.s32.totalorder %s12, 0
      %p46 = por %p44, %p45
      %p47 = scmp.ne.s32.totalorder %s36, %s39
      %p48 = scmp.eq.s32.totalorder %s17, 1
      %p49 = por %p47, %p48
      %p50 = scmp.ne.s32.totalorder %s39, %s40
      %p51 = scmp.eq.s32.totalorder %s17, 0
      %p52 = por %p50, %p51
      %p53 = scmp.ne.s32.totalorder %s39, %s40
      %p54 = scmp.eq.s32.totalorder %s18, 1
      %p55 = por %p53, %p54
      %p57 = scmp.ne.s32.totalorder %s40, %s56
      %p58 = scmp.eq.s32.totalorder %s18, 0
      %p59 = por %p57, %p58
      %s61 = sadd.s32 %s60, 1
      %p64 = scmp.eq.s32.totalorder %s12, 1
      %p65 = scmp.ne.s32.totalorder %s60, %s62
      %p66 = scmp.eq.s32.totalorder %s12, 0
      %p67 = por %p65, %p66
      %p68 = scmp.ne.s32.totalorder %s60, %s62
      %p69 = scmp.eq.s32.totalorder %s17, 1
      %p70 = por %p68, %p69
      %p71 = scmp.ne.s32.totalorder %s62, %s63
      %p72 = scmp.eq.s32.totalorder %s17, 0
      %p73 = por %p71, %p72
      %p74 = scmp.ne.s32.totalorder %s62, %s63
      %p75 = scmp.eq.s32.totalorder %s18, 1
      %p76 = por %p74, %p75
      %p78 = scmp.ne.s32.totalorder %s63, %s77
      %p79 = scmp.eq.s32.totalorder %s18, 0
      %p80 = por %p78, %p79
      %s82 = sadd.s32 %s81, 1
      %p85 = scmp.eq.s32.totalorder %s12, 1
      %p86 = scmp.ne.s32.totalorder %s81, %s83
      %p87 = scmp.eq.s32.totalorder %s12, 0
      %p88 = por %p86, %p87
      %p89 = scmp.ne.s32.totalorder %s81, %s83
      %p90 = scmp.eq.s32.totalorder %s17, 1
      %p91 = por %p89, %p90
      %p92 = scmp.ne.s32.totalorder %s83, %s84
      %p93 = scmp.eq.s32.totalorder %s17, 0
      %p94 = por %p92, %p93
      %p95 = scmp.ne.s32.totalorder %s83, %s84
      %p96 = scmp.eq.s32.totalorder %s18, 1
      %p97 = por %p95, %p96
      %p99 = scmp.ne.s32.totalorder %s84, %s98
      %p100 = scmp.eq.s32.totalorder %s18, 0
      %p101 = por %p99, %p100
      %s102 = ssub.s32 %s19, %s31
      %s103 = ssub.s32 %s20, %s27
      %s104 = sor.u32 %s102, %s103
      %p105 = scmp.eq.s32.totalorder %s104, 0
      %s107 = sadd.s32 %s106, 1
      %s108 = scalar_select %p105, %s106, %s107
      %p111 = pneg %p105
      %p112 = scmp.eq.s32.totalorder %s12, 1
      %p113 = por %p111, %p112
      %p114 = scmp.ne.s32.totalorder %s106, %s109
      %p115 = scmp.eq.s32.totalorder %s12, 0
      %p116 = por %p114, %p115
      %p117 = scmp.ne.s32.totalorder %s106, %s109
      %p118 = scmp.eq.s32.totalorder %s17, 1
      %p119 = por %p117, %p118
      %p120 = scmp.ne.s32.totalorder %s109, %s110
      %p121 = scmp.eq.s32.totalorder %s17, 0
      %p122 = por %p120, %p121
      %p123 = scmp.ne.s32.totalorder %s109, %s110
      %p124 = scmp.eq.s32.totalorder %s18, 1
      %p125 = por %p123, %p124
      %p127 = scmp.ne.s32.totalorder %s110, %s126
      %p128 = scmp.eq.s32.totalorder %s18, 0
      %p129 = por %p127, %p128
      %p130 = scmp.le.s32.totalorder 1, %s12
      %p131 = scmp.lt.s32.totalorder %s12, 3
      %p132 = pnand %p130, %p131
      %p133 = pneg %p132
      // Predicated region
      $region9: #{softmax_pooling_1d.1} parent=5 // pred_check
        _
      $region10: #{softmax_pooling_1d.1} parent=5 // pred_check_branch
        %135 = sbr.rel (%p132) target = $region12
      $region11: #{softmax_pooling_1d.1} parent=5 // pred_region
        %s136 = ssub.s32 %s12, 1
        // Predicated region
        $region13: #{softmax_pooling_1d.1} parent=11 // pred_check
          %p137 = pneg %p73
        $region14: #{softmax_pooling_1d.1} parent=11 // pred_check_branch
          %139 = sbr.rel (%p137) target = $region16
        $region15: #{softmax_pooling_1d.1} parent=11 // pred_region
          _
        $region16: #{softmax_pooling_1d.1} parent=11 // pred_fallthru
          _
        // Predicated region
        $region17: #{softmax_pooling_1d.1} parent=11 // pred_check
          %p140 = pneg %p94
        $region18: #{softmax_pooling_1d.1} parent=11 // pred_check_branch
          %142 = sbr.rel (%p140) target = $region20
        $region19: #{softmax_pooling_1d.1} parent=11 // pred_region
          _
        $region20: #{softmax_pooling_1d.1} parent=11 // pred_fallthru
          _
      $region12: #{softmax_pooling_1d.1} parent=5 // pred_fallthru
        _
      %p143 = scmp.lt.s32.totalorder %s12, 2
      // Predicated region
      $region21: #{softmax_pooling_1d.1} parent=5 // pred_check
        %p144 = pneg %p143
      $region22: #{softmax_pooling_1d.1} parent=5 // pred_check_branch
        %146 = sbr.rel (%p144) target = $region24
      $region23: #{softmax_pooling_1d.1} parent=5 // pred_region
        // Predicated region
        $region25: #{softmax_pooling_1d.1} parent=23 // pred_check
          %p147 = pneg %p46
        $region26: #{softmax_pooling_1d.1} parent=23 // pred_check_branch
          %149 = sbr.rel (%p147) target = $region28
        $region27: #{softmax_pooling_1d.1} parent=23 // pred_region
          %p150 = scmp.lt.s32.totalorder %s19, 1
          %s151 = scalar_select %p150, %s19, 1
          %p152 = scmp.lt.s32.totalorder %s20, 0
          %s153 = scalar_select %p152, %s20, 0
          %s154 = sadd.s32 %s153, %s151
          %s155 = smul.addr %s154, 4
          %s156 = scalar_lea.vmem %s0, %s155
        $region28: #{softmax_pooling_1d.1} parent=23 // pred_fallthru
          _
      $region24: #{softmax_pooling_1d.1} parent=5 // pred_fallthru
        _
      %p157 = scmp.le.s32.totalorder 1, %s12
      %p158 = scmp.lt.s32.totalorder %s12, 3
      %p159 = pnand %p157, %p158
      %p160 = pneg %p159
      // Predicated region
      $region29: #{softmax_pooling_1d.1} parent=5 // pred_check
        _
      $region30: #{softmax_pooling_1d.1} parent=5 // pred_check_branch
        %162 = sbr.rel (%p159) target = $region32
      $region31: #{softmax_pooling_1d.1} parent=5 // pred_region
        %s163 = ssub.s32 %s12, 1
        %p164 = scmp.lt.s32.totalorder %s21, 1
        %s165 = scalar_select %p164, %s21, 1
        %p166 = scmp.lt.s32.totalorder %s22, 0
        %s167 = scalar_select %p166, %s22, 0
        %s168 = sadd.s32 %s167, %s165
        %s169 = smul.addr %s168, 4
        %s170 = scalar_lea.vmem %s0, %s169
        %p171 = pneg %p52
        %p172 = pneg %p49
        %p173 = pneg %p73
        %p174 = pneg %p70
        %p175 = pneg %p94
        %p176 = pneg %p91
        %p177 = pneg %p122
        %p178 = pneg %p119
        %s179 = sand.u32 %s109, 1
        %s180 = scalar_lea.sflag [#allocation3], %s179
        %s181 = sand.u32 %s109, 1
        %s182 = smul.addr %s181, 4
        %s183 = scalar_lea.vmem [#allocation2], %s182
        %p184 = scmp.lt.s32.totalorder %s21, 1
        %s185 = scalar_select %p184, %s21, 1
        %p186 = scmp.lt.s32.totalorder %s22, 0
        %s187 = scalar_select %p186, %s22, 0
        %s188 = sadd.s32 %s187, %s185
        %s189 = smul.addr %s188, 4
        %s190 = scalar_lea.vmem %s0, %s189
        %v191 = vld [vmem:[%s190] sm:$0xf]
        %v192 = vld [vmem:[%s1] sm:$0xf]
        %vm193 = vcmask 31744
        %v195 = vsel %vm193, %v192, 0
        %vm197 = vcmask 1043456
        %v199 = vsel %vm197, %v191, 0
        %201 = vmatprep.subr.mxu0 0.0
        %202 = vmatpush1.msra.mxu0 %v199
        %203 = vmatprep.subr.mxu0 0.0
        %204 = vmatpush1.msra.mxu0 0.0
        %205 = vmatprep.subr.mxu0 0.0
        %206 = vmatpush1.msra.mxu0 0.0
        %207 = vmatprep.subr.mxu0 0.0
        %208 = vmatpush1.msra.mxu0 0.0
        %209 = vmatprep.subr.mxu0 0.0
        %210 = vmatpush1.msra.mxu0 0.0
        %211 = vmatprep.subr.mxu0 0.0
        %212 = vmatpush1.msra.mxu0 0.0
        %213 = vmatprep.subr.mxu0 0.0
        %214 = vmatpush1.msra.mxu0 0.0
        %215 = vmatprep.subr.mxu0 0.0
        %216 = vmatpush1.msra.mxu0 0.0
        %217 = vmatprep.subr.mxu0 0.0
        %218 = vmatpush1.msra.mxu0 0.0
        %219 = vmatprep.subr.mxu0 0.0
        %220 = vmatpush1.msra.mxu0 0.0
        %221 = vmatprep.subr.mxu0 0.0
        %222 = vmatpush1.msra.mxu0 0.0
        %223 = vmatprep.subr.mxu0 0.0
        %224 = vmatpush1.msra.mxu0 0.0
        %225 = vmatprep.subr.mxu0 0.0
        %226 = vmatpush1.msra.mxu0 0.0
        %227 = vmatprep.subr.mxu0 0.0
        %228 = vmatpush1.msra.mxu0 0.0
        %229 = vmatprep.subr.mxu0 0.0
        %230 = vmatpush1.msra.mxu0 0.0
        %231 = vmatprep.subr.mxu0 0.0
        %232 = vmatpush1.msra.mxu0 0.0
        %233 = vmatprep.subr.mxu0 0.0
        %234 = vmatpush1.msra.mxu0 0.0
        %235 = vmatprep.subr.mxu0 0.0
        %236 = vmatpush1.msra.mxu0 0.0
        %237 = vmatprep.subr.mxu0 0.0
        %238 = vmatpush1.msra.mxu0 0.0
        %239 = vmatprep.subr.mxu0 0.0
        %240 = vmatpush1.msra.mxu0 0.0
        %241 = vmatprep.subr.mxu0 0.0
        %242 = vmatpush1.msra.mxu0 0.0
        %243 = vmatprep.subr.mxu0 0.0
        %244 = vmatpush1.msra.mxu0 0.0
        %245 = vmatprep.subr.mxu0 0.0
        %246 = vmatpush1.msra.mxu0 0.0
        %247 = vmatprep.subr.mxu0 0.0
        %248 = vmatpush1.msra.mxu0 0.0
        %249 = vmatprep.subr.mxu0 0.0
        %250 = vmatpush1.msra.mxu0 0.0
        %251 = vmatprep.subr.mxu0 0.0
        %252 = vmatpush1.msra.mxu0 0.0
        %253 = vmatprep.subr.mxu0 0.0
        %254 = vmatpush1.msra.mxu0 0.0
        %255 = vmatprep.subr.mxu0 0.0
        %256 = vmatpush1.msra.mxu0 0.0
        %257 = vmatprep.subr.mxu0 0.0
        %258 = vmatpush1.msra.mxu0 0.0
        %259 = vmatprep.subr.mxu0 0.0
        %260 = vmatpush1.msra.mxu0 0.0
        %261 = vmatprep.subr.mxu0 0.0
        %262 = vmatpush1.msra.mxu0 0.0
        %263 = vmatprep.subr.mxu0 0.0
        %264 = vmatpush1.msra.mxu0 0.0
        %265 = vmatprep.mubr.f32.mxu0 0.0
        %266 = vmatmul.mubr.f32.gmra.mrb[0].mxu0 %v195
        %v267 = vpop.f32.mrb[0].mxu0
        %v268 = vadd.f32 0.0, %v267
        %v269 = vpop.f32.mrb[0].mxu0
        %270 = vdwg.mxu0
        %vm271 = vcmask 125952
        %v272 = vsel %vm271, %v268, -inf
        %273 = vmax.xlane.f32.xlu0 %v272
        %v274 = vpop.xlane.xlu0 %273
        %v275 = vsub.f32 %v268, %v274
        %v276 = vmul.f32 %v275, 1.442695
        %v277 = vpow.pop %v276
        %v278 = vmul.f32 %v191, %v277
        %v279 = vld [vmem:[%s2] sm:$0xff]
        %v280 = vld [vmem:[%s2 + $0x8] sm:$0xff]
        %vm281 = vcmask 130048
        %v283 = vsel %vm281, %v278, 0
        %285 = vmatprep.subr.mxu0 0.0
        %286 = vmatpush1.msra.mxu0 %v279
        %287 = vmatprep.subr.mxu0 0.0
        %288 = vmatpush1.msra.mxu0 %v280
        %289 = vmatprep.subr.mxu0 0.0
        %290 = vmatpush1.msra.mxu0 0.0
        %291 = vmatprep.subr.mxu0 0.0
        %292 = vmatpush1.msra.mxu0 0.0
        %293 = vmatprep.subr.mxu0 0.0
        %294 = vmatpush1.msra.mxu0 0.0
        %295 = vmatprep.subr.mxu0 0.0
        %296 = vmatpush1.msra.mxu0 0.0
        %297 = vmatprep.subr.mxu0 0.0
        %298 = vmatpush1.msra.mxu0 0.0
        %299 = vmatprep.subr.mxu0 0.0
        %300 = vmatpush1.msra.mxu0 0.0
        %301 = vmatprep.subr.mxu0 0.0
        %302 = vmatpush1.msra.mxu0 0.0
        %303 = vmatprep.subr.mxu0 0.0
        %304 = vmatpush1.msra.mxu0 0.0
        %305 = vmatprep.subr.mxu0 0.0
        %306 = vmatpush1.msra.mxu0 0.0
        %307 = vmatprep.subr.mxu0 0.0
        %308 = vmatpush1.msra.mxu0 0.0
        %309 = vmatprep.subr.mxu0 0.0
        %310 = vmatpush1.msra.mxu0 0.0
        %311 = vmatprep.subr.mxu0 0.0
        %312 = vmatpush1.msra.mxu0 0.0
        %313 = vmatprep.subr.mxu0 0.0
        %314 = vmatpush1.msra.mxu0 0.0
        %315 = vmatprep.subr.mxu0 0.0
        %316 = vmatpush1.msra.mxu0 0.0
        %317 = vmatprep.subr.mxu0 0.0
        %318 = vmatpush1.msra.mxu0 0.0
        %319 = vmatprep.subr.mxu0 0.0
        %320 = vmatpush1.msra.mxu0 0.0
        %321 = vmatprep.subr.mxu0 0.0
        %322 = vmatpush1.msra.mxu0 0.0
        %323 = vmatprep.subr.mxu0 0.0
        %324 = vmatpush1.msra.mxu0 0.0
        %325 = vmatprep.subr.mxu0 0.0
        %326 = vmatpush1.msra.mxu0 0.0
        %327 = vmatprep.subr.mxu0 0.0
        %328 = vmatpush1.msra.mxu0 0.0
        %329 = vmatprep.subr.mxu0 0.0
        %330 = vmatpush1.msra.mxu0 0.0
        %331 = vmatprep.subr.mxu0 0.0
        %332 = vmatpush1.msra.mxu0 0.0
        %333 = vmatprep.subr.mxu0 0.0
        %334 = vmatpush1.msra.mxu0 0.0
        %335 = vmatprep.subr.mxu0 0.0
        %336 = vmatpush1.msra.mxu0 0.0
        %337 = vmatprep.subr.mxu0 0.0
        %338 = vmatpush1.msra.mxu0 0.0
        %339 = vmatprep.subr.mxu0 0.0
        %340 = vmatpush1.msra.mxu0 0.0
        %341 = vmatprep.subr.mxu0 0.0
        %342 = vmatpush1.msra.mxu0 0.0
        %343 = vmatprep.subr.mxu0 0.0
        %344 = vmatpush1.msra.mxu0 0.0
        %345 = vmatprep.subr.mxu0 0.0
        %346 = vmatpush1.msra.mxu0 0.0
        %347 = vmatprep.subr.mxu0 0.0
        %348 = vmatpush1.msra.mxu0 0.0
        %349 = vmatprep.mubr.f32.mxu0 0.0
        %350 = vmatmul.mubr.f32.gmra.mrb[0].mxu0 %v283
        %v351 = vpop.f32.mrb[0].mxu0
        %v352 = vadd.f32 0.0, %v351
        %v353 = vpop.f32.mrb[0].mxu0
        %354 = vdwg.mxu0
        %v356 = vsel %vm281, %v277, 0
        %358 = vmatprep.subr.mxu0 0.0
        %359 = vmatpush1.msra.mxu0 %v279
        %360 = vmatprep.subr.mxu0 0.0
        %361 = vmatpush1.msra.mxu0 %v280
        %362 = vmatprep.subr.mxu0 0.0
        %363 = vmatpush1.msra.mxu0 0.0
        %364 = vmatprep.subr.mxu0 0.0
        %365 = vmatpush1.msra.mxu0 0.0
        %366 = vmatprep.subr.mxu0 0.0
        %367 = vmatpush1.msra.mxu0 0.0
        %368 = vmatprep.subr.mxu0 0.0
        %369 = vmatpush1.msra.mxu0 0.0
        %370 = vmatprep.subr.mxu0 0.0
        %371 = vmatpush1.msra.mxu0 0.0
        %372 = vmatprep.subr.mxu0 0.0
        %373 = vmatpush1.msra.mxu0 0.0
        %374 = vmatprep.subr.mxu0 0.0
        %375 = vmatpush1.msra.mxu0 0.0
        %376 = vmatprep.subr.mxu0 0.0
        %377 = vmatpush1.msra.mxu0 0.0
        %378 = vmatprep.subr.mxu0 0.0
        %379 = vmatpush1.msra.mxu0 0.0
        %380 = vmatprep.subr.mxu0 0.0
        %381 = vmatpush1.msra.mxu0 0.0
        %382 = vmatprep.subr.mxu0 0.0
        %383 = vmatpush1.msra.mxu0 0.0
        %384 = vmatprep.subr.mxu0 0.0
        %385 = vmatpush1.msra.mxu0 0.0
        %386 = vmatprep.subr.mxu0 0.0
        %387 = vmatpush1.msra.mxu0 0.0
        %388 = vmatprep.subr.mxu0 0.0
        %389 = vmatpush1.msra.mxu0 0.0
        %390 = vmatprep.subr.mxu0 0.0
        %391 = vmatpush1.msra.mxu0 0.0
        %392 = vmatprep.subr.mxu0 0.0
        %393 = vmatpush1.msra.mxu0 0.0
        %394 = vmatprep.subr.mxu0 0.0
        %395 = vmatpush1.msra.mxu0 0.0
        %396 = vmatprep.subr.mxu0 0.0
        %397 = vmatpush1.msra.mxu0 0.0
        %398 = vmatprep.subr.mxu0 0.0
        %399 = vmatpush1.msra.mxu0 0.0
        %400 = vmatprep.subr.mxu0 0.0
        %401 = vmatpush1.msra.mxu0 0.0
        %402 = vmatprep.subr.mxu0 0.0
        %403 = vmatpush1.msra.mxu0 0.0
        %404 = vmatprep.subr.mxu0 0.0
        %405 = vmatpush1.msra.mxu0 0.0
        %406 = vmatprep.subr.mxu0 0.0
        %407 = vmatpush1.msra.mxu0 0.0
        %408 = vmatprep.subr.mxu0 0.0
        %409 = vmatpush1.msra.mxu0 0.0
        %410 = vmatprep.subr.mxu0 0.0
        %411 = vmatpush1.msra.mxu0 0.0
        %412 = vmatprep.subr.mxu0 0.0
        %413 = vmatpush1.msra.mxu0 0.0
        %414 = vmatprep.subr.mxu0 0.0
        %415 = vmatpush1.msra.mxu0 0.0
        %416 = vmatprep.subr.mxu0 0.0
        %417 = vmatpush1.msra.mxu0 0.0
        %418 = vmatprep.subr.mxu0 0.0
        %419 = vmatpush1.msra.mxu0 0.0
        %420 = vmatprep.subr.mxu0 0.0
        %421 = vmatpush1.msra.mxu0 0.0
        %422 = vmatprep.mubr.f32.mxu0 0.0
        %423 = vmatmul.mubr.f32.gmra.mrb[0].mxu0 %v356
        %v424 = vpop.f32.mrb[0].mxu0
        %v425 = vadd.f32 0.0, %v424
        %v426 = vpop.f32.mrb[0].mxu0
        %427 = vdwg.mxu0
        %v428 = vmax.f32 %v425, 1.1754944e-38
        %v429 = vrcp.pop %v428
        %v430 = vmul.f32 %v352, %v429
        %vm431 = vcmask 60416
        %432 = vst.msk [vmem:[%s183] sm:$0xf] %vm431, %v430
        %s433 = sand.u32 %s109, 1
        %s434 = scalar_lea.sflag [#allocation3], %s433
        %s435 = sand.u32 %s109, 1
        %s436 = smul.addr %s435, 4
        %s437 = scalar_lea.vmem [#allocation2], %s436
        // Predicated region
        $region33: #{softmax_pooling_1d.1} parent=31 // pred_check
          %p438 = pneg %p119
        $region34: #{softmax_pooling_1d.1} parent=31 // pred_check_branch
          %440 = sbr.rel (%p438) target = $region36
        $region35: #{softmax_pooling_1d.1} parent=31 // pred_region
          %s442 = ssub.s32 64, 64
          %443 = vsyncadd %s434, %s442
          %s444 = sadd.s32 %s22, %s21
          %s445 = smul.addr %s444, 64
          %s446 = scalar_lea.hbm %s3, %s445
          %s448 = sshll.u32 %s437, 4
          %s449 = int_to_ptr.vmem [resolvable:$true] %s448
          %451 = dma.vmem_to_hbm [thread:$0]  %s449, 64, %s446, %s434
        $region36: #{softmax_pooling_1d.1} parent=31 // pred_fallthru
          _
      $region32: #{softmax_pooling_1d.1} parent=5 // pred_fallthru
        _
      %p452 = scmp.le.s32.totalorder 2, %s12
      // Predicated region
      $region37: #{softmax_pooling_1d.1} parent=5 // pred_check
        %p453 = pneg %p452
      $region38: #{softmax_pooling_1d.1} parent=5 // pred_check_branch
        %455 = sbr.rel (%p453) target = $region40
      $region39: #{softmax_pooling_1d.1} parent=5 // pred_region
        %s456 = ssub.s32 %s12, 2
        // Predicated region
        $region41: #{softmax_pooling_1d.1} parent=39 // pred_check
          %p457 = pneg %p125
        $region42: #{softmax_pooling_1d.1} parent=39 // pred_check_branch
          %459 = sbr.rel (%p457) target = $region44
        $region43: #{softmax_pooling_1d.1} parent=39 // pred_region
          %s460 = sand.u32 %s110, 1
          %s461 = scalar_lea.sflag [#allocation3], %s460
          %s462 = sand.u32 %s110, 1
          %s463 = smul.addr %s462, 4
          %s464 = scalar_lea.vmem [#allocation2], %s463
          %465 = dma.done %s461, 64
        $region44: #{softmax_pooling_1d.1} parent=39 // pred_fallthru
          _
      $region40: #{softmax_pooling_1d.1} parent=5 // pred_fallthru
        _
    $region6: #{softmax_pooling_1d.1} parent=1 // loop_footer
      %s16 = sadd.s32 1, %s12
    $region7: #{softmax_pooling_1d.1} parent=1 // loop_footer_branch
      %11 = sbr.rel target = $region3
    $region8: #{softmax_pooling_1d.1} parent=1 // loop_exit
      _
    %466 = vsyncpa [#allocation3], 1
    %s467 = scalar_lea.sflag [#allocation3], 1
    %468 = vsyncpa %s467, 1

</llo_original>
